<compile_context>
chip_gen: v5e
topology: v5e:2x2
jax: 0.10.0
libtpu: 0.0.40
codegen_flags: <defaults>
</compile_context>

<pallas_src>
import functools

import jax
import jax.numpy as jnp
from jax.experimental import pallas as pl
from jax.experimental.pallas import tpu as pltpu

_OUT_PAD = 128  # lane-dense output width (action_shape padded to a full vreg lane)


def _silu_f32(x):
    # SiLU(x) = x * sigmoid(x) = 0.5 * x * (1 + tanh(x / 2))
    # tanh goes to the EUP slot (single transcendental); mul/add are cheap VALU.
    return 0.5 * x * (1.0 + jnp.tanh(0.5 * x))


def mlp_kernel(x_ref,
               w1_ref, b1_ref,
               w2_ref, b2_ref,
               w3_ref, b3_ref,
               w4_ref, b4_ref,
               o_ref):
    # Cast x f32 -> bf16 in-kernel (rides the input pipeline; no extra XLA op).
    x = x_ref[...].astype(w1_ref.dtype)

    # Matmuls in bf16 with f32 accumulation on the MXU; bias-add + SiLU in f32.
    h = jnp.dot(x, w1_ref[...], preferred_element_type=jnp.float32) + b1_ref[...]
    h = _silu_f32(h).astype(w2_ref.dtype)

    h = jnp.dot(h, w2_ref[...], preferred_element_type=jnp.float32) + b2_ref[...]
    h = _silu_f32(h).astype(w3_ref.dtype)

    h = jnp.dot(h, w3_ref[...], preferred_element_type=jnp.float32) + b3_ref[...]
    h = _silu_f32(h).astype(w4_ref.dtype)

    h = jnp.dot(h, w4_ref[...], preferred_element_type=jnp.float32) + b4_ref[...]
    o_ref[...] = h.astype(o_ref.dtype)


def _round_up(a, m):
    return (a + m - 1) // m * m


def prepare_params(params, compute_dtype=jnp.bfloat16):
    """One-time preprocessing of odN parameters (cache the result).

    * w1..w4 cast to bf16 (MXU-native operands).
    * b1..b4 kept f32 (added to f32 accumulators).
    * final layer zero-padded to _OUT_PAD output columns (lane-dense stores).
    """
    action_shape = params["w4"].shape[1]
    assert action_shape <= _OUT_PAD, (
        f"action_shape={action_shape} exceeds lane pad {_OUT_PAD}")

    # Sanity check: all weights/biases must comfortably fit as VMEM residents.
    resident_bytes = sum(params[f"w{i}"].size * 2 + params[f"b{i}"].size * 4
                         for i in range(1, 5))
    assert resident_bytes < 8 * 1024 * 1024, "weights too large for full VMEM residency"

    pad = _OUT_PAD - action_shape
    prepared = {
        "w1": params["w1"].astype(compute_dtype),
        "w2": params["w2"].astype(compute_dtype),
        "w3": params["w3"].astype(compute_dtype),
        "w4": jnp.pad(params["w4"], ((0, 0), (0, pad))).astype(compute_dtype),
        "b1": params["b1"].astype(jnp.float32),
        "b2": params["b2"].astype(jnp.float32),
        "b3": params["b3"].astype(jnp.float32),
        "b4": jnp.pad(params["b4"], ((0, 0), (0, pad))).astype(jnp.float32),
    }
    return prepared, action_shape


def _pick_tile(B, block_b):
    """Batch tile: multiple of 8, <= block_b, preferring a divisor of B."""
    if B <= block_b:
        return _round_up(B, 8)
    if B % 8 == 0:
        cand = (block_b // 8) * 8
        while cand >= 8:
            if B % cand == 0:
                return cand
            cand -= 8
    return block_b


@functools.partial(jax.jit, static_argnames=("action_shape", "block_b"))
def odn_forward(x, prepared, action_shape, block_b=1024):
    """Pallas implementation of odN.forward.

    x: [B, state_shape] float32
    prepared: output of prepare_params (bf16 weights, f32 biases, padded layer 4)
    returns: [B, action_shape] float32
    """
    B, F_in = x.shape
    w1, b1 = prepared["w1"], prepared["b1"]
    w2, b2 = prepared["w2"], prepared["b2"]
    w3, b3 = prepared["w3"], prepared["b3"]
    w4, b4 = prepared["w4"], prepared["b4"]

    # ---- batch tiling: one big tile when it fits, divisor-of-B tile otherwise.
    bb = _pick_tile(B, block_b)
    B_pad = _round_up(B, bb)
    grid = (B_pad // bb,)

    # Only pad x when the tile does not divide B (avoids an HBM copy of x).
    if B_pad != B:
        x = jnp.pad(x, ((0, B_pad - B), (0, 0)))

    def full_spec(arr):
        # Whole (small) array resident in VMEM every grid step.
        return pl.BlockSpec(arr.shape, lambda i: (0, 0))

    h1, h2, h3 = w1.shape[1], w2.shape[1], w3.shape[1]
    flops = 2 * B_pad * (F_in * h1 + h1 * h2 + h2 * h3 + h3 * _OUT_PAD)
    transcendentals = B_pad * (h1 + h2 + h3)
    bytes_accessed = (x.size * x.dtype.itemsize
                      + sum(a.size * a.dtype.itemsize
                            for a in (w1, w2, w3, w4, b1, b2, b3, b4))
                      + B_pad * _OUT_PAD * 2)

    out = pl.pallas_call(
        mlp_kernel,
        out_shape=jax.ShapeDtypeStruct((B_pad, _OUT_PAD), jnp.bfloat16),
        grid_spec=pl.GridSpec(
            grid=grid,
            in_specs=[
                pl.BlockSpec((bb, F_in), lambda i: (i, 0)),
                full_spec(w1), full_spec(b1),
                full_spec(w2), full_spec(b2),
                full_spec(w3), full_spec(b3),
                full_spec(w4), full_spec(b4),
            ],
            out_specs=pl.BlockSpec((bb, _OUT_PAD), lambda i: (i, 0)),
        ),
        compiler_params=pltpu.CompilerParams(
            dimension_semantics=("parallel",)),
        cost_estimate=pl.CostEstimate(
            flops=flops,
            transcendentals=transcendentals,
            bytes_accessed=bytes_accessed),
    )(x, w1, b1, w2, b2, w3, b3, w4, b4)

    # Tiny slice + cast (only [B, action_shape] elements touch f32 in HBM).
    return out[:B, :action_shape].astype(jnp.float32)


def init_params(key, state_shape, action_shape):
    """Deterministic init mimicking nn.Linear default (uniform +/- 1/sqrt(fan_in))."""
    dims = [(state_shape, 128), (128, 128), (128, 64), (64, action_shape)]
    params = {}
    keys = jax.random.split(key, 2 * len(dims))
    for idx, (fan_in, fan_out) in enumerate(dims):
        bound = 1.0 / jnp.sqrt(float(fan_in))
        w = jax.random.uniform(keys[2 * idx], (fan_in, fan_out),
                               dtype=jnp.float32, minval=-bound, maxval=bound)
        b = jax.random.uniform(keys[2 * idx + 1], (1, fan_out),
                               dtype=jnp.float32, minval=-bound, maxval=bound)
        params[f"w{idx + 1}"] = w
        params[f"b{idx + 1}"] = b
    return params


def reference_forward(x, params):
    h = x
    for i in range(1, 4):
        h = h @ params[f"w{i}"] + params[f"b{i}"]
        h = h * jax.nn.sigmoid(h)
    return h @ params["w4"] + params["b4"]


if __name__ == "__main__":
    key = jax.random.PRNGKey(0)
    k_param, k_x = jax.random.split(key)

    state_shape = 32
    action_shape = 8
    batch = 64  # multiple of 8 -> single tile, no batch padding

    params = init_params(k_param, state_shape, action_shape)
    x = jax.random.normal(k_x, (batch, state_shape), dtype=jnp.float32)

    # One-time parameter preprocessing (cached by the caller; NOT in the hot path).
    prepared, act = prepare_params(params)

    out = odn_forward(x, prepared, action_shape=act)
    out = jax.block_until_ready(out)

    ref = reference_forward(x, params)
    assert out.shape == (batch, action_shape), out.shape
    # bf16 matmul operands / bf16 output with f32 accumulation: bf16-level tolerance.
    assert jnp.allclose(out, ref, atol=5e-2, rtol=5e-2), (
        "mismatch vs reference, max abs err = "
        f"{float(jnp.max(jnp.abs(out - ref)))}")

    print("KERNEL_OK")
</pallas_src>

<mosaic_0001>
module attributes {stable_mosaic.version = 11 : i64} {
  func.func @mlp_kernel(%arg0: i32, %arg1: memref<64x32xf32, #tpu.memory_space<vmem>>, %arg2: memref<32x128xbf16, #tpu.memory_space<vmem>>, %arg3: memref<1x128xf32, #tpu.memory_space<vmem>>, %arg4: memref<128x128xbf16, #tpu.memory_space<vmem>>, %arg5: memref<1x128xf32, #tpu.memory_space<vmem>>, %arg6: memref<128x64xbf16, #tpu.memory_space<vmem>>, %arg7: memref<1x64xf32, #tpu.memory_space<vmem>>, %arg8: memref<64x128xbf16, #tpu.memory_space<vmem>>, %arg9: memref<1x128xf32, #tpu.memory_space<vmem>>, %arg10: memref<64x128xbf16, #tpu.memory_space<vmem>>) attributes {dimension_semantics = [#tpu.dimension_semantics<parallel>], iteration_bounds = array<i64: 1>, scalar_prefetch = 0 : i64, scratch_operands = 0 : i64, tpu.core_type = #tpu.core_type<tc>, window_params = [{transform_indices = @transform_0, window_bounds = array<i64: 64, 32>}, {pipeline_mode = #tpu.pipeline_mode<synchronous>, transform_indices = @transform_1, window_bounds = array<i64: 32, 128>}, {pipeline_mode = #tpu.pipeline_mode<synchronous>, transform_indices = @transform_2, window_bounds = array<i64: 1, 128>}, {pipeline_mode = #tpu.pipeline_mode<synchronous>, transform_indices = @transform_3, window_bounds = array<i64: 128, 128>}, {pipeline_mode = #tpu.pipeline_mode<synchronous>, transform_indices = @transform_4, window_bounds = array<i64: 1, 128>}, {pipeline_mode = #tpu.pipeline_mode<synchronous>, transform_indices = @transform_5, window_bounds = array<i64: 128, 64>}, {pipeline_mode = #tpu.pipeline_mode<synchronous>, transform_indices = @transform_6, window_bounds = array<i64: 1, 64>}, {pipeline_mode = #tpu.pipeline_mode<synchronous>, transform_indices = @transform_7, window_bounds = array<i64: 64, 128>}, {pipeline_mode = #tpu.pipeline_mode<synchronous>, transform_indices = @transform_8, window_bounds = array<i64: 1, 128>}, {transform_indices = @transform_9, window_bounds = array<i64: 64, 128>}]} {
    %c0 = arith.constant 0 : index
    %c0_0 = arith.constant 0 : index
    %0 = vector.load %arg1[%c0, %c0_0] : memref<64x32xf32, #tpu.memory_space<vmem>>, vector<64x32xf32>
    %1 = arith.truncf %0 : vector<64x32xf32> to vector<64x32xbf16>
    %c0_1 = arith.constant 0 : index
    %c0_2 = arith.constant 0 : index
    %2 = vector.load %arg2[%c0_1, %c0_2] : memref<32x128xbf16, #tpu.memory_space<vmem>>, vector<32x128xbf16>
    %cst = arith.constant dense<0.000000e+00> : vector<64x128xf32>
    %3 = tpu.matmul %1, %2, %cst {dimension_numbers = #tpu.dot_dimension_numbers<[1], [0], [0], [1], [0, 0, 1, 1], [], []>} : vector<64x32xbf16>, vector<32x128xbf16>, vector<64x128xf32> -> vector<64x128xf32>
    %c0_3 = arith.constant 0 : index
    %c0_4 = arith.constant 0 : index
    %4 = vector.load %arg3[%c0_3, %c0_4] : memref<1x128xf32, #tpu.memory_space<vmem>>, vector<1x128xf32>
    %5 = vector.broadcast %4 : vector<1x128xf32> to vector<64x128xf32>
    %6 = arith.addf %3, %5 : vector<64x128xf32>
    %cst_5 = arith.constant 5.000000e-01 : f32
    %7 = vector.broadcast %cst_5 : f32 to vector<64x128xf32>
    %8 = arith.mulf %7, %6 : vector<64x128xf32>
    %cst_6 = arith.constant 5.000000e-01 : f32
    %9 = vector.broadcast %cst_6 : f32 to vector<64x128xf32>
    %10 = arith.mulf %9, %6 : vector<64x128xf32>
    %11 = math.tanh %10 : vector<64x128xf32>
    %cst_7 = arith.constant 1.000000e+00 : f32
    %12 = vector.broadcast %cst_7 : f32 to vector<64x128xf32>
    %13 = arith.addf %12, %11 : vector<64x128xf32>
    %14 = arith.mulf %8, %13 : vector<64x128xf32>
    %15 = arith.truncf %14 : vector<64x128xf32> to vector<64x128xbf16>
    %c0_8 = arith.constant 0 : index
    %c0_9 = arith.constant 0 : index
    %16 = vector.load %arg4[%c0_8, %c0_9] : memref<128x128xbf16, #tpu.memory_space<vmem>>, vector<128x128xbf16>
    %cst_10 = arith.constant dense<0.000000e+00> : vector<64x128xf32>
    %17 = tpu.matmul %15, %16, %cst_10 {dimension_numbers = #tpu.dot_dimension_numbers<[1], [0], [0], [1], [0, 0, 1, 1], [], []>} : vector<64x128xbf16>, vector<128x128xbf16>, vector<64x128xf32> -> vector<64x128xf32>
    %c0_11 = arith.constant 0 : index
    %c0_12 = arith.constant 0 : index
    %18 = vector.load %arg5[%c0_11, %c0_12] : memref<1x128xf32, #tpu.memory_space<vmem>>, vector<1x128xf32>
    %19 = vector.broadcast %18 : vector<1x128xf32> to vector<64x128xf32>
    %20 = arith.addf %17, %19 : vector<64x128xf32>
    %cst_13 = arith.constant 5.000000e-01 : f32
    %21 = vector.broadcast %cst_13 : f32 to vector<64x128xf32>
    %22 = arith.mulf %21, %20 : vector<64x128xf32>
    %cst_14 = arith.constant 5.000000e-01 : f32
    %23 = vector.broadcast %cst_14 : f32 to vector<64x128xf32>
    %24 = arith.mulf %23, %20 : vector<64x128xf32>
    %25 = math.tanh %24 : vector<64x128xf32>
    %cst_15 = arith.constant 1.000000e+00 : f32
    %26 = vector.broadcast %cst_15 : f32 to vector<64x128xf32>
    %27 = arith.addf %26, %25 : vector<64x128xf32>
    %28 = arith.mulf %22, %27 : vector<64x128xf32>
    %29 = arith.truncf %28 : vector<64x128xf32> to vector<64x128xbf16>
    %c0_16 = arith.constant 0 : index
    %c0_17 = arith.constant 0 : index
    %30 = vector.load %arg6[%c0_16, %c0_17] : memref<128x64xbf16, #tpu.memory_space<vmem>>, vector<128x64xbf16>
    %cst_18 = arith.constant dense<0.000000e+00> : vector<64x64xf32>
    %31 = tpu.matmul %29, %30, %cst_18 {dimension_numbers = #tpu.dot_dimension_numbers<[1], [0], [0], [1], [0, 0, 1, 1], [], []>} : vector<64x128xbf16>, vector<128x64xbf16>, vector<64x64xf32> -> vector<64x64xf32>
    %c0_19 = arith.constant 0 : index
    %c0_20 = arith.constant 0 : index
    %32 = vector.load %arg7[%c0_19, %c0_20] : memref<1x64xf32, #tpu.memory_space<vmem>>, vector<1x64xf32>
    %33 = vector.broadcast %32 : vector<1x64xf32> to vector<64x64xf32>
    %34 = arith.addf %31, %33 : vector<64x64xf32>
    %cst_21 = arith.constant 5.000000e-01 : f32
    %35 = vector.broadcast %cst_21 : f32 to vector<64x64xf32>
    %36 = arith.mulf %35, %34 : vector<64x64xf32>
    %cst_22 = arith.constant 5.000000e-01 : f32
    %37 = vector.broadcast %cst_22 : f32 to vector<64x64xf32>
    %38 = arith.mulf %37, %34 : vector<64x64xf32>
    %39 = math.tanh %38 : vector<64x64xf32>
    %cst_23 = arith.constant 1.000000e+00 : f32
    %40 = vector.broadcast %cst_23 : f32 to vector<64x64xf32>
    %41 = arith.addf %40, %39 : vector<64x64xf32>
    %42 = arith.mulf %36, %41 : vector<64x64xf32>
    %43 = arith.truncf %42 : vector<64x64xf32> to vector<64x64xbf16>
    %c0_24 = arith.constant 0 : index
    %c0_25 = arith.constant 0 : index
    %44 = vector.load %arg8[%c0_24, %c0_25] : memref<64x128xbf16, #tpu.memory_space<vmem>>, vector<64x128xbf16>
    %cst_26 = arith.constant dense<0.000000e+00> : vector<64x128xf32>
    %45 = tpu.matmul %43, %44, %cst_26 {dimension_numbers = #tpu.dot_dimension_numbers<[1], [0], [0], [1], [0, 0, 1, 1], [], []>} : vector<64x64xbf16>, vector<64x128xbf16>, vector<64x128xf32> -> vector<64x128xf32>
    %c0_27 = arith.constant 0 : index
    %c0_28 = arith.constant 0 : index
    %46 = vector.load %arg9[%c0_27, %c0_28] : memref<1x128xf32, #tpu.memory_space<vmem>>, vector<1x128xf32>
    %47 = vector.broadcast %46 : vector<1x128xf32> to vector<64x128xf32>
    %48 = arith.addf %45, %47 : vector<64x128xf32>
    %49 = arith.truncf %48 : vector<64x128xf32> to vector<64x128xbf16>
    %c0_29 = arith.constant 0 : index
    %c0_30 = arith.constant 0 : index
    %50 = vector.load %arg10[%c0_29, %c0_30] : memref<64x128xbf16, #tpu.memory_space<vmem>>, vector<64x128xbf16>
    tpu.vector_store %arg10[%c0_29, %c0_30], %49 {strides = array<i32>} : memref<64x128xbf16, #tpu.memory_space<vmem>>, vector<64x128xbf16>,
    return
  }
  func.func @transform_0(%arg0: i32) -> (i32, i32) {
    %c0_i32 = arith.constant 0 : i32
    %c0_i32_0 = arith.constant 0 : i32
    return %arg0, %c0_i32 : i32, i32
  }
  func.func @transform_1(%arg0: i32) -> (i32, i32) {
    %c0_i32 = arith.constant 0 : i32
    %c0_i32_0 = arith.constant 0 : i32
    %c0_i32_1 = arith.constant 0 : i32
    return %c0_i32, %c0_i32_0 : i32, i32
  }
  func.func @transform_2(%arg0: i32) -> (i32, i32) {
    %c0_i32 = arith.constant 0 : i32
    %c0_i32_0 = arith.constant 0 : i32
    %c0_i32_1 = arith.constant 0 : i32
    return %c0_i32, %c0_i32_0 : i32, i32
  }
  func.func @transform_3(%arg0: i32) -> (i32, i32) {
    %c0_i32 = arith.constant 0 : i32
    %c0_i32_0 = arith.constant 0 : i32
    %c0_i32_1 = arith.constant 0 : i32
    return %c0_i32, %c0_i32_0 : i32, i32
  }
  func.func @transform_4(%arg0: i32) -> (i32, i32) {
    %c0_i32 = arith.constant 0 : i32
    %c0_i32_0 = arith.constant 0 : i32
    %c0_i32_1 = arith.constant 0 : i32
    return %c0_i32, %c0_i32_0 : i32, i32
  }
  func.func @transform_5(%arg0: i32) -> (i32, i32) {
    %c0_i32 = arith.constant 0 : i32
    %c0_i32_0 = arith.constant 0 : i32
    %c0_i32_1 = arith.constant 0 : i32
    return %c0_i32, %c0_i32_0 : i32, i32
  }
  func.func @transform_6(%arg0: i32) -> (i32, i32) {
    %c0_i32 = arith.constant 0 : i32
    %c0_i32_0 = arith.constant 0 : i32
    %c0_i32_1 = arith.constant 0 : i32
    return %c0_i32, %c0_i32_0 : i32, i32
  }
  func.func @transform_7(%arg0: i32) -> (i32, i32) {
    %c0_i32 = arith.constant 0 : i32
    %c0_i32_0 = arith.constant 0 : i32
    %c0_i32_1 = arith.constant 0 : i32
    return %c0_i32, %c0_i32_0 : i32, i32
  }
  func.func @transform_8(%arg0: i32) -> (i32, i32) {
    %c0_i32 = arith.constant 0 : i32
    %c0_i32_0 = arith.constant 0 : i32
    %c0_i32_1 = arith.constant 0 : i32
    return %c0_i32, %c0_i32_0 : i32, i32
  }
  func.func @transform_9(%arg0: i32) -> (i32, i32) {
    %c0_i32 = arith.constant 0 : i32
    %c0_i32_0 = arith.constant 0 : i32
    return %arg0, %c0_i32 : i32, i32
  }
}

</mosaic_0001>

<llo_original>
// kernel: odn_forward.1
$region0: #{odn_forward.1}
  #allocation0 [shape = 'u32[]', space=smem, size = 0x4, offset = 0x4, fixed_abs, tag = 'smem constant byte address 0x4 - core index']
  #allocation1 [shape = 'u32[72,128]{1,0:T(1,128)}', space=vmem, size = 0x9000, scoped, tag = 'internal scratch']
  %s0 = inlined_call_operand.vmem [shape: f32[64,32], index: 0, kind: input, shape index: {}]
  %s1 = inlined_call_operand.vmem [shape: bf16[32,128], index: 1, kind: input, shape index: {}]
  %s2 = inlined_call_operand.vmem [shape: f32[1,128], index: 2, kind: input, shape index: {}]
  %s3 = inlined_call_operand.vmem [shape: bf16[128,128], index: 3, kind: input, shape index: {}]
  %s4 = inlined_call_operand.vmem [shape: f32[1,128], index: 4, kind: input, shape index: {}]
  %s5 = inlined_call_operand.vmem [shape: bf16[128,64], index: 5, kind: input, shape index: {}]
  %s6 = inlined_call_operand.vmem [shape: f32[1,64], index: 6, kind: input, shape index: {}]
  %s7 = inlined_call_operand.vmem [shape: bf16[64,128], index: 7, kind: input, shape index: {}]
  %s8 = inlined_call_operand.vmem [shape: f32[1,128], index: 8, kind: input, shape index: {}]
  %s9 = inlined_call_operand.vmem [shape: bf16[64,128], index: 9, kind: output, shape index: {}]
  %s10 = sld [smem:[#allocation0]]
  $region46: #{odn_forward.1} parent=0
    _
  %s12 = ssub.s32 1, %s10
  %s13 = scalar_select 0, %s12, %s10
  // Predicated region
  $region2: #{odn_forward.1} parent=0 // pred_check
    _
  $region3: #{odn_forward.1} parent=0 // pred_check_branch
    %15 = sbr.rel (0) target = $region5
  $region4: #{odn_forward.1} parent=0 // pred_region
    _
  $region5: #{odn_forward.1} parent=0 // pred_fallthru
    _
  // Predicated region
  $region6: #{odn_forward.1} parent=0 // pred_check
    _
  $region7: #{odn_forward.1} parent=0 // pred_check_branch
    %17 = sbr.rel (0) target = $region9
  $region8: #{odn_forward.1} parent=0 // pred_region
    _
  $region9: #{odn_forward.1} parent=0 // pred_fallthru
    _
  // Predicated region
  $region10: #{odn_forward.1} parent=0 // pred_check
    _
  $region11: #{odn_forward.1} parent=0 // pred_check_branch
    %19 = sbr.rel (0) target = $region13
  $region12: #{odn_forward.1} parent=0 // pred_region
    _
  $region13: #{odn_forward.1} parent=0 // pred_fallthru
    _
  // Predicated region
  $region14: #{odn_forward.1} parent=0 // pred_check
    _
  $region15: #{odn_forward.1} parent=0 // pred_check_branch
    %21 = sbr.rel (0) target = $region17
  $region16: #{odn_forward.1} parent=0 // pred_region
    _
  $region17: #{odn_forward.1} parent=0 // pred_fallthru
    _
  // Predicated region
  $region18: #{odn_forward.1} parent=0 // pred_check
    _
  $region19: #{odn_forward.1} parent=0 // pred_check_branch
    %23 = sbr.rel (0) target = $region21
  $region20: #{odn_forward.1} parent=0 // pred_region
    _
  $region21: #{odn_forward.1} parent=0 // pred_fallthru
    _
  // Predicated region
  $region22: #{odn_forward.1} parent=0 // pred_check
    _
  $region23: #{odn_forward.1} parent=0 // pred_check_branch
    %25 = sbr.rel (0) target = $region25
  $region24: #{odn_forward.1} parent=0 // pred_region
    _
  $region25: #{odn_forward.1} parent=0 // pred_fallthru
    _
  // Predicated region
  $region26: #{odn_forward.1} parent=0 // pred_check
    _
  $region27: #{odn_forward.1} parent=0 // pred_check_branch
    %27 = sbr.rel (0) target = $region29
  $region28: #{odn_forward.1} parent=0 // pred_region
    _
  $region29: #{odn_forward.1} parent=0 // pred_fallthru
    _
  // Predicated region
  $region30: #{odn_forward.1} parent=0 // pred_check
    _
  $region31: #{odn_forward.1} parent=0 // pred_check_branch
    %29 = sbr.rel (0) target = $region33
  $region32: #{odn_forward.1} parent=0 // pred_region
    _
  $region33: #{odn_forward.1} parent=0 // pred_fallthru
    _
  // Predicated region
  $region34: #{odn_forward.1} parent=0 // pred_check
    _
  $region35: #{odn_forward.1} parent=0 // pred_check_branch
    %31 = sbr.rel (0) target = $region37
  $region36: #{odn_forward.1} parent=0 // pred_region
    _
  $region37: #{odn_forward.1} parent=0 // pred_fallthru
    _
  %v33 = vld [vmem:[%s0] sm:$0xff]
  %v34 = vld [vmem:[%s0 + $0x8] sm:$0xff]
  %v35 = vld [vmem:[%s0 + $0x10] sm:$0xff]
  %v36 = vld [vmem:[%s0 + $0x18] sm:$0xff]
  %v37 = vld [vmem:[%s0 + $0x20] sm:$0xff]
  %v38 = vld [vmem:[%s0 + $0x28] sm:$0xff]
  %v39 = vld [vmem:[%s0 + $0x30] sm:$0xff]
  %v40 = vld [vmem:[%s0 + $0x38] sm:$0xff]
  %v41 = vpack.c.bf16 %v34, %v33
  %v42 = vpack.c.bf16 %v36, %v35
  %v43 = vpack.c.bf16 %v38, %v37
  %v44 = vpack.c.bf16 %v40, %v39
  %v45 = vld [vmem:[%s1] sm:$0xf]
  %v46 = vld [vmem:[%s1 + $0x4] sm:$0xf]
  %v47 = vld [vmem:[%s1 + $0x8] sm:$0xf]
  %v48 = vld [vmem:[%s1 + $0xc] sm:$0xf]
  %v49 = vld [vmem:[%s2] sm:$0x1]
  %v51 = vperm.slane %v49, 0
  %v57 = vunpack.c.l.b16 %v45
  %v58 = vunpack.c.l.b16 %v46
  %v59 = vunpack.c.l.b16 %v47
  %v60 = vunpack.c.l.b16 %v48
  %v61 = vpack.c.b16 %v58, %v57
  %v62 = vpack.c.b16 %v60, %v59
  %vm65 = vcmask 261120
  %v67 = vsel %vm65, %v41, 0
  %v70 = vsel %vm65, %v42, 0
  %v73 = vsel %vm65, %v43, 0
  %v76 = vsel %vm65, %v44, 0
  %78 = vmatpush.bf16.msra.mxu0 0
  %79 = vmatpush.bf16.msra.mxu0 0
  %80 = vmatpush.bf16.msra.mxu0 0
  %81 = vmatpush.bf16.msra.mxu0 0
  %82 = vmatpush.bf16.msra.mxu0 0
  %83 = vmatpush.bf16.msra.mxu0 0
  %84 = vmatpush.bf16.msra.mxu0 %v62
  %85 = vmatpush.bf16.msra.mxu0 %v61
  %86 = vmatmul.bf16.gmra.mxu0 %v67
  %v87 = vpop.f32.mrf.mxu0
  %v88 = vadd.f32 %v51, %v87
  %v89 = vpop.f32.mrf.mxu0
  %v90 = vadd.f32 %v51, %v89
  %91 = vmatmul.bf16.gmra.mxu0 %v70
  %v92 = vpop.f32.mrf.mxu0
  %v93 = vadd.f32 %v51, %v92
  %v94 = vpop.f32.mrf.mxu0
  %v95 = vadd.f32 %v51, %v94
  %96 = vmatmul.bf16.gmra.mxu0 %v73
  %v97 = vpop.f32.mrf.mxu0
  %v98 = vadd.f32 %v51, %v97
  %v99 = vpop.f32.mrf.mxu0
  %v100 = vadd.f32 %v51, %v99
  %101 = vmatmul.bf16.gmra.mxu0 %v76
  %v102 = vpop.f32.mrf.mxu0
  %v103 = vadd.f32 %v51, %v102
  %v104 = vpop.f32.mrf.mxu0
  %v105 = vadd.f32 %v51, %v104
  %106 = vdwg.mxu0
  %v107 = vmul.f32 %v88, 0.5
  %v108 = vmul.f32 %v90, 0.5
  %v109 = vmul.f32 %v93, 0.5
  %v110 = vmul.f32 %v95, 0.5
  %v111 = vmul.f32 %v98, 0.5
  %v112 = vmul.f32 %v100, 0.5
  %v113 = vmul.f32 %v103, 0.5
  %v114 = vmul.f32 %v105, 0.5
  %v115 = vtanh.pop %v107
  %v116 = vtanh.pop %v108
  %v117 = vtanh.pop %v109
  %v118 = vtanh.pop %v110
  %v119 = vtanh.pop %v111
  %v120 = vtanh.pop %v112
  %v121 = vtanh.pop %v113
  %v122 = vtanh.pop %v114
  %v123 = vadd.f32 %v115, 1.0
  %v124 = vadd.f32 %v116, 1.0
  %v125 = vadd.f32 %v117, 1.0
  %v126 = vadd.f32 %v118, 1.0
  %v127 = vadd.f32 %v119, 1.0
  %v128 = vadd.f32 %v120, 1.0
  %v129 = vadd.f32 %v121, 1.0
  %v130 = vadd.f32 %v122, 1.0
  %v131 = vmul.f32 %v107, %v123
  %v132 = vmul.f32 %v108, %v124
  %v133 = vmul.f32 %v109, %v125
  %v134 = vmul.f32 %v110, %v126
  %v135 = vmul.f32 %v111, %v127
  %v136 = vmul.f32 %v112, %v128
  %v137 = vmul.f32 %v113, %v129
  %v138 = vmul.f32 %v114, %v130
  %v139 = vpack.c.bf16 %v132, %v131
  %v140 = vpack.c.bf16 %v134, %v133
  %v141 = vpack.c.bf16 %v136, %v135
  %v142 = vpack.c.bf16 %v138, %v137
  %v143 = vld [vmem:[%s3] sm:$0xf]
  %v144 = vld [vmem:[%s3 + $0x4] sm:$0xf]
  %v145 = vld [vmem:[%s3 + $0x8] sm:$0xf]
  %v146 = vld [vmem:[%s3 + $0xc] sm:$0xf]
  %v147 = vld [vmem:[%s3 + $0x10] sm:$0xf]
  %v148 = vld [vmem:[%s3 + $0x14] sm:$0xf]
  %v149 = vld [vmem:[%s3 + $0x18] sm:$0xf]
  %v150 = vld [vmem:[%s3 + $0x1c] sm:$0xf]
  %v151 = vld [vmem:[%s3 + $0x20] sm:$0xf]
  %v152 = vld [vmem:[%s3 + $0x24] sm:$0xf]
  %v153 = vld [vmem:[%s3 + $0x28] sm:$0xf]
  %v154 = vld [vmem:[%s3 + $0x2c] sm:$0xf]
  %v155 = vld [vmem:[%s3 + $0x30] sm:$0xf]
  %v156 = vld [vmem:[%s3 + $0x34] sm:$0xf]
  %v157 = vld [vmem:[%s3 + $0x38] sm:$0xf]
  %v158 = vld [vmem:[%s3 + $0x3c] sm:$0xf]
  %v159 = vld [vmem:[%s4] sm:$0x1]
  %v161 = vperm.slane %v159, 0
  %v179 = vunpack.c.l.b16 %v143
  %v180 = vunpack.c.l.b16 %v144
  %v181 = vunpack.c.l.b16 %v145
  %v182 = vunpack.c.l.b16 %v146
  %v183 = vunpack.c.l.b16 %v147
  %v184 = vunpack.c.l.b16 %v148
  %v185 = vunpack.c.l.b16 %v149
  %v186 = vunpack.c.l.b16 %v150
  %v187 = vunpack.c.l.b16 %v151
  %v188 = vunpack.c.l.b16 %v152
  %v189 = vunpack.c.l.b16 %v153
  %v190 = vunpack.c.l.b16 %v154
  %v191 = vunpack.c.l.b16 %v155
  %v192 = vunpack.c.l.b16 %v156
  %v193 = vunpack.c.l.b16 %v157
  %v194 = vunpack.c.l.b16 %v158
  %v195 = vpack.c.b16 %v180, %v179
  %v196 = vpack.c.b16 %v182, %v181
  %v197 = vpack.c.b16 %v184, %v183
  %v198 = vpack.c.b16 %v186, %v185
  %v199 = vpack.c.b16 %v188, %v187
  %v200 = vpack.c.b16 %v190, %v189
  %v201 = vpack.c.b16 %v192, %v191
  %v202 = vpack.c.b16 %v194, %v193
  %211 = vmatpush.bf16.msra.mxu0 %v202
  %212 = vmatpush.bf16.msra.mxu0 %v201
  %213 = vmatpush.bf16.msra.mxu0 %v200
  %214 = vmatpush.bf16.msra.mxu0 %v199
  %215 = vmatpush.bf16.msra.mxu0 %v198
  %216 = vmatpush.bf16.msra.mxu0 %v197
  %217 = vmatpush.bf16.msra.mxu0 %v196
  %218 = vmatpush.bf16.msra.mxu0 %v195
  %219 = vmatmul.bf16.gmra.mxu0 %v139
  %v220 = vpop.f32.mrf.mxu0
  %v221 = vadd.f32 %v161, %v220
  %v222 = vpop.f32.mrf.mxu0
  %v223 = vadd.f32 %v161, %v222
  %224 = vmatmul.bf16.gmra.mxu0 %v140
  %v225 = vpop.f32.mrf.mxu0
  %v226 = vadd.f32 %v161, %v225
  %v227 = vpop.f32.mrf.mxu0
  %v228 = vadd.f32 %v161, %v227
  %229 = vmatmul.bf16.gmra.mxu0 %v141
  %v230 = vpop.f32.mrf.mxu0
  %v231 = vadd.f32 %v161, %v230
  %v232 = vpop.f32.mrf.mxu0
  %v233 = vadd.f32 %v161, %v232
  %234 = vmatmul.bf16.gmra.mxu0 %v142
  %v235 = vpop.f32.mrf.mxu0
  %v236 = vadd.f32 %v161, %v235
  %v237 = vpop.f32.mrf.mxu0
  %v238 = vadd.f32 %v161, %v237
  %239 = vdwg.mxu0
  %v240 = vmul.f32 %v221, 0.5
  %v241 = vmul.f32 %v223, 0.5
  %v242 = vmul.f32 %v226, 0.5
  %v243 = vmul.f32 %v228, 0.5
  %v244 = vmul.f32 %v231, 0.5
  %v245 = vmul.f32 %v233, 0.5
  %v246 = vmul.f32 %v236, 0.5
  %v247 = vmul.f32 %v238, 0.5
  %v248 = vtanh.pop %v240
  %v249 = vtanh.pop %v241
  %v250 = vtanh.pop %v242
  %v251 = vtanh.pop %v243
  %v252 = vtanh.pop %v244
  %v253 = vtanh.pop %v245
  %v254 = vtanh.pop %v246
  %v255 = vtanh.pop %v247
  %v256 = vadd.f32 %v248, 1.0
  %v257 = vadd.f32 %v249, 1.0
  %v258 = vadd.f32 %v250, 1.0
  %v259 = vadd.f32 %v251, 1.0
  %v260 = vadd.f32 %v252, 1.0
  %v261 = vadd.f32 %v253, 1.0
  %v262 = vadd.f32 %v254, 1.0
  %v263 = vadd.f32 %v255, 1.0
  %v264 = vmul.f32 %v240, %v256
  %v265 = vmul.f32 %v241, %v257
  %v266 = vmul.f32 %v242, %v258
  %v267 = vmul.f32 %v243, %v259
  %v268 = vmul.f32 %v244, %v260
  %v269 = vmul.f32 %v245, %v261
  %v270 = vmul.f32 %v246, %v262
  %v271 = vmul.f32 %v247, %v263
  %v272 = vpack.c.bf16 %v265, %v264
  %v273 = vpack.c.bf16 %v267, %v266
  %v274 = vpack.c.bf16 %v269, %v268
  %v275 = vpack.c.bf16 %v271, %v270
  %v276 = vld [vmem:[%s5] sm:$0xf]
  %v277 = vld [vmem:[%s5 + $0x4] sm:$0xf]
  %v278 = vld [vmem:[%s5 + $0x8] sm:$0xf]
  %v279 = vld [vmem:[%s5 + $0xc] sm:$0xf]
  %v280 = vld [vmem:[%s5 + $0x10] sm:$0xf]
  %v281 = vld [vmem:[%s5 + $0x14] sm:$0xf]
  %v282 = vld [vmem:[%s5 + $0x18] sm:$0xf]
  %v283 = vld [vmem:[%s5 + $0x1c] sm:$0xf]
  %v284 = vld [vmem:[%s5 + $0x20] sm:$0xf]
  %v285 = vld [vmem:[%s5 + $0x24] sm:$0xf]
  %v286 = vld [vmem:[%s5 + $0x28] sm:$0xf]
  %v287 = vld [vmem:[%s5 + $0x2c] sm:$0xf]
  %v288 = vld [vmem:[%s5 + $0x30] sm:$0xf]
  %v289 = vld [vmem:[%s5 + $0x34] sm:$0xf]
  %v290 = vld [vmem:[%s5 + $0x38] sm:$0xf]
  %v291 = vld [vmem:[%s5 + $0x3c] sm:$0xf]
  %v292 = vld [vmem:[%s6] sm:$0x1]
  %v294 = vperm.slane %v292, 0
  %v312 = vunpack.c.l.b16 %v276
  %v313 = vunpack.c.l.b16 %v277
  %v314 = vunpack.c.l.b16 %v278
  %v315 = vunpack.c.l.b16 %v279
  %v316 = vunpack.c.l.b16 %v280
  %v317 = vunpack.c.l.b16 %v281
  %v318 = vunpack.c.l.b16 %v282
  %v319 = vunpack.c.l.b16 %v283
  %v320 = vunpack.c.l.b16 %v284
  %v321 = vunpack.c.l.b16 %v285
  %v322 = vunpack.c.l.b16 %v286
  %v323 = vunpack.c.l.b16 %v287
  %v324 = vunpack.c.l.b16 %v288
  %v325 = vunpack.c.l.b16 %v289
  %v326 = vunpack.c.l.b16 %v290
  %v327 = vunpack.c.l.b16 %v291
  %v328 = vpack.c.b16 %v313, %v312
  %v329 = vpack.c.b16 %v315, %v314
  %v330 = vpack.c.b16 %v317, %v316
  %v331 = vpack.c.b16 %v319, %v318
  %v332 = vpack.c.b16 %v321, %v320
  %v333 = vpack.c.b16 %v323, %v322
  %v334 = vpack.c.b16 %v325, %v324
  %v335 = vpack.c.b16 %v327, %v326
  %344 = vmatpush.bf16.msra.mxu0 %v335
  %345 = vmatpush.bf16.msra.mxu0 %v334
  %346 = vmatpush.bf16.msra.mxu0 %v333
  %347 = vmatpush.bf16.msra.mxu0 %v332
  %348 = vmatpush.bf16.msra.mxu0 %v331
  %349 = vmatpush.bf16.msra.mxu0 %v330
  %350 = vmatpush.bf16.msra.mxu0 %v329
  %351 = vmatpush.bf16.msra.mxu0 %v328
  %352 = vmatmul.bf16.gmra.mxu0 %v272
  %v353 = vpop.f32.mrf.mxu0
  %v354 = vadd.f32 %v294, %v353
  %v355 = vpop.f32.mrf.mxu0
  %v356 = vadd.f32 %v294, %v355
  %357 = vmatmul.bf16.gmra.mxu0 %v273
  %v358 = vpop.f32.mrf.mxu0
  %v359 = vadd.f32 %v294, %v358
  %v360 = vpop.f32.mrf.mxu0
  %v361 = vadd.f32 %v294, %v360
  %362 = vmatmul.bf16.gmra.mxu0 %v274
  %v363 = vpop.f32.mrf.mxu0
  %v364 = vadd.f32 %v294, %v363
  %v365 = vpop.f32.mrf.mxu0
  %v366 = vadd.f32 %v294, %v365
  %367 = vmatmul.bf16.gmra.mxu0 %v275
  %v368 = vpop.f32.mrf.mxu0
  %v369 = vadd.f32 %v294, %v368
  %v370 = vpop.f32.mrf.mxu0
  %v371 = vadd.f32 %v294, %v370
  %372 = vdwg.mxu0
  %v373 = vmul.f32 %v354, 0.5
  %v374 = vmul.f32 %v356, 0.5
  %v375 = vmul.f32 %v359, 0.5
  %v376 = vmul.f32 %v361, 0.5
  %v377 = vmul.f32 %v364, 0.5
  %v378 = vmul.f32 %v366, 0.5
  %v379 = vmul.f32 %v369, 0.5
  %v380 = vmul.f32 %v371, 0.5
  %v381 = vtanh.pop %v373
  %v382 = vtanh.pop %v374
  %v383 = vtanh.pop %v375
  %v384 = vtanh.pop %v376
  %v385 = vtanh.pop %v377
  %v386 = vtanh.pop %v378
  %v387 = vtanh.pop %v379
  %v388 = vtanh.pop %v380
  %v389 = vadd.f32 %v381, 1.0
  %v390 = vadd.f32 %v382, 1.0
  %v391 = vadd.f32 %v383, 1.0
  %v392 = vadd.f32 %v384, 1.0
  %v393 = vadd.f32 %v385, 1.0
  %v394 = vadd.f32 %v386, 1.0
  %v395 = vadd.f32 %v387, 1.0
  %v396 = vadd.f32 %v388, 1.0
  %v397 = vmul.f32 %v373, %v389
  %v398 = vmul.f32 %v374, %v390
  %v399 = vmul.f32 %v375, %v391
  %v400 = vmul.f32 %v376, %v392
  %v401 = vmul.f32 %v377, %v393
  %v402 = vmul.f32 %v378, %v394
  %v403 = vmul.f32 %v379, %v395
  %v404 = vmul.f32 %v380, %v396
  %v405 = vpack.c.bf16 %v398, %v397
  %v406 = vpack.c.bf16 %v400, %v399
  %v407 = vpack.c.bf16 %v402, %v401
  %v408 = vpack.c.bf16 %v404, %v403
  %v409 = vld [vmem:[%s7] sm:$0xf]
  %v410 = vld [vmem:[%s7 + $0x4] sm:$0xf]
  %v411 = vld [vmem:[%s7 + $0x8] sm:$0xf]
  %v412 = vld [vmem:[%s7 + $0xc] sm:$0xf]
  %v413 = vld [vmem:[%s7 + $0x10] sm:$0xf]
  %v414 = vld [vmem:[%s7 + $0x14] sm:$0xf]
  %v415 = vld [vmem:[%s7 + $0x18] sm:$0xf]
  %v416 = vld [vmem:[%s7 + $0x1c] sm:$0xf]
  %v417 = vld [vmem:[%s8] sm:$0x1]
  %v419 = vperm.slane %v417, 0
  %v429 = vunpack.c.l.b16 %v409
  %v430 = vunpack.c.l.b16 %v410
  %v431 = vunpack.c.l.b16 %v411
  %v432 = vunpack.c.l.b16 %v412
  %v433 = vunpack.c.l.b16 %v413
  %v434 = vunpack.c.l.b16 %v414
  %v435 = vunpack.c.l.b16 %v415
  %v436 = vunpack.c.l.b16 %v416
  %v437 = vpack.c.b16 %v430, %v429
  %v438 = vpack.c.b16 %v432, %v431
  %v439 = vpack.c.b16 %v434, %v433
  %v440 = vpack.c.b16 %v436, %v435
  %vm445 = vcmask 523264
  %v447 = vsel %vm445, %v405, 0
  %v450 = vsel %vm445, %v406, 0
  %v453 = vsel %vm445, %v407, 0
  %v456 = vsel %vm445, %v408, 0
  %458 = vmatpush.bf16.msra.mxu0 0
  %459 = vmatpush.bf16.msra.mxu0 0
  %460 = vmatpush.bf16.msra.mxu0 0
  %461 = vmatpush.bf16.msra.mxu0 0
  %462 = vmatpush.bf16.msra.mxu0 %v440
  %463 = vmatpush.bf16.msra.mxu0 %v439
  %464 = vmatpush.bf16.msra.mxu0 %v438
  %465 = vmatpush.bf16.msra.mxu0 %v437
  %466 = vmatmul.bf16.gmra.mxu0 %v447
  %v467 = vpop.f32.mrf.mxu0
  %v468 = vadd.f32 %v419, %v467
  %v469 = vpop.f32.mrf.mxu0
  %v470 = vadd.f32 %v419, %v469
  %471 = vmatmul.bf16.gmra.mxu0 %v450
  %v472 = vpop.f32.mrf.mxu0
  %v473 = vadd.f32 %v419, %v472
  %v474 = vpop.f32.mrf.mxu0
  %v475 = vadd.f32 %v419, %v474
  %476 = vmatmul.bf16.gmra.mxu0 %v453
  %v477 = vpop.f32.mrf.mxu0
  %v478 = vadd.f32 %v419, %v477
  %v479 = vpop.f32.mrf.mxu0
  %v480 = vadd.f32 %v419, %v479
  %481 = vmatmul.bf16.gmra.mxu0 %v456
  %v482 = vpop.f32.mrf.mxu0
  %v483 = vadd.f32 %v419, %v482
  %v484 = vpop.f32.mrf.mxu0
  %v485 = vadd.f32 %v419, %v484
  %486 = vdwg.mxu0
  %v487 = vpack.c.bf16 %v468, %v468
  %v488 = vpack.c.bf16 %v470, %v470
  %v489 = vpack.c.bf16 %v473, %v473
  %v490 = vpack.c.bf16 %v475, %v475
  %v491 = vpack.c.bf16 %v478, %v478
  %v492 = vpack.c.bf16 %v480, %v480
  %v493 = vpack.c.bf16 %v483, %v483
  %v494 = vpack.c.bf16 %v485, %v485
  %495 = vst [vmem:[%s9] sm:$0xf] %v487
  %496 = vst [vmem:[%s9 + $0x4] sm:$0xf] %v488
  %497 = vst [vmem:[%s9 + $0x8] sm:$0xf] %v489
  %498 = vst [vmem:[%s9 + $0xc] sm:$0xf] %v490
  %499 = vst [vmem:[%s9 + $0x10] sm:$0xf] %v491
  %500 = vst [vmem:[%s9 + $0x14] sm:$0xf] %v492
  %501 = vst [vmem:[%s9 + $0x18] sm:$0xf] %v493
  %502 = vst [vmem:[%s9 + $0x1c] sm:$0xf] %v494
  // Predicated region
  $region38: #{odn_forward.1} parent=0 // pred_check
    _
  $region39: #{odn_forward.1} parent=0 // pred_check_branch
    %504 = sbr.rel (0) target = $region41
  $region40: #{odn_forward.1} parent=0 // pred_region
    _
  $region41: #{odn_forward.1} parent=0 // pred_fallthru
    _
  // Predicated region
  $region42: #{odn_forward.1} parent=0 // pred_check
    _
  $region43: #{odn_forward.1} parent=0 // pred_check_branch
    %506 = sbr.rel (0) target = $region45
  $region44: #{odn_forward.1} parent=0 // pred_region
    _
  $region45: #{odn_forward.1} parent=0 // pred_fallthru
    _

</llo_original>
